<compile_context>
chip_gen: v6e
topology: v6e:2x2x1
jax: 0.10.0
libtpu: 0.0.40
codegen_flags: <defaults>
</compile_context>

<pallas_src>
import jax
import jax.numpy as jnp
from jax.experimental import pallas as pl
from jax.experimental.pallas import tpu as pltpu

# Default (sweepable) tile sizes: tn multiple of 128 (256 feeds v6e/v7x's
# 256-wide MXU; clamps to 128 automatically on small target_window).
_TM, _TN, _TK = 256, 256, 512


def _round_up(a, m):
    return ((a + m - 1) // m) * m


def prepare_flatten_head_params(weight, bias, *, compute_dtype=jnp.bfloat16,
                                tn=_TN, tk=_TK):
    """One-time (parameter-load-time) prep.

    weight: [target_window, nf] (PyTorch nn.Linear layout), bias: [target_window].
    Returns (w, b) with w: [nf_padded, T_padded] in `compute_dtype` and
    b: [1, T_padded] float32, so the per-call forward does no weight
    transpose / cast / pad through HBM.
    """
    target_window, nf = weight.shape
    tn = min(tn, _round_up(target_window, 128))
    tk = min(tk, _round_up(nf, 128))
    t_pad = _round_up(target_window, tn)
    nf_pad = _round_up(nf, tk)
    w = jnp.asarray(weight, jnp.float32).T.astype(compute_dtype)
    w = jnp.pad(w, ((0, nf_pad - nf), (0, t_pad - target_window)))
    b = jnp.asarray(bias, jnp.float32).reshape(1, target_window)
    b = jnp.pad(b, ((0, 0), (0, t_pad - target_window)))
    return w, b


def _flatten_head_kernel(x_ref, w_ref, b_ref, o_ref, acc_ref):
    # x_ref: (tm, tk) bf16, w_ref: (tk, tn) bf16, b_ref: (1, tn) f32,
    # o_ref: (tm, tn), acc_ref: (tm, tn) f32 scratch (persists across k).
    k = pl.program_id(2)

    @pl.when(k == 0)
    def _init():
        # Fold the bias add into the accumulator init (no epilogue VALU pass).
        acc_ref[...] = jnp.broadcast_to(b_ref[...], acc_ref.shape)

    acc_ref[...] += jnp.dot(x_ref[...], w_ref[...],
                            preferred_element_type=jnp.float32)

    @pl.when(k == pl.num_programs(2) - 1)
    def _store():
        o_ref[...] = acc_ref[...].astype(o_ref.dtype)


def flatten_head_forward(x, w, b, target_window, *, tm=_TM, tn=_TN, tk=_TK):
    """x: [B, n_vars, d_model, patch_num]; (w, b) from prepare_flatten_head_params.
    Returns [B, n_vars, target_window] in x.dtype."""
    B, n_vars, d_model, patch_num = x.shape
    nf = d_model * patch_num
    M = B * n_vars
    nf_pad, t_pad = w.shape
    compute_dtype = w.dtype

    # nn.Flatten(start_dim=-2) + fold batch dims into rows (layout glue).
    x2d = x.reshape(M, nf).astype(compute_dtype)

    # Tile sizes: (8,128)-aligned, clamped to the padded extents.
    tm = min(tm, _round_up(M, 8))
    tn = min(tn, t_pad)
    tk = min(tk, nf_pad)
    assert t_pad % tn == 0 and nf_pad % tk == 0, "params prepared with different tiling"
    m_pad = _round_up(M, tm)
    if (m_pad, nf_pad) != (M, nf):
        x2d = jnp.pad(x2d, ((0, m_pad - M), (0, nf_pad - nf)))

    grid = (m_pad // tm, t_pad // tn, nf_pad // tk)  # reduction (K) axis last

    out_padded = pl.pallas_call(
        _flatten_head_kernel,
        out_shape=jax.ShapeDtypeStruct((m_pad, t_pad), x.dtype),
        grid_spec=pltpu.PrefetchScalarGridSpec(
            num_scalar_prefetch=0,
            grid=grid,
            in_specs=[
                pl.BlockSpec((tm, tk), lambda i, j, k: (i, k)),   # X tile
                pl.BlockSpec((tk, tn), lambda i, j, k: (k, j)),   # W tile
                pl.BlockSpec((1, tn), lambda i, j, k: (0, j)),    # bias tile
            ],
            out_specs=pl.BlockSpec((tm, tn), lambda i, j, k: (i, j)),
            scratch_shapes=[pltpu.VMEM((tm, tn), jnp.float32)],
        ),
        compiler_params=pltpu.CompilerParams(
            # M/T tiles are independent (megacore-shardable on v7x); K reduces.
            dimension_semantics=("parallel", "parallel", "arbitrary"),
        ),
        # NOTE: tiles fit comfortably under the default scoped VMEM everywhere;
        # pipeline_mode=pl.Buffered(3) on the W spec is a further tunable if the
        # weight stream is still DMA-exposed at very large nf.
    )(x2d, w, b)

    # Slice off lane/row padding; Dropout(head_dropout=0) is identity.
    # TODO(synk): training-mode dropout (p>0) not implemented.
    out = out_padded[:M, :target_window]
    return out.reshape(B, n_vars, target_window)


if __name__ == "__main__":
    # Small shapes consistent with the module.
    B, n_vars, d_model, patch_num = 2, 4, 16, 8
    nf = d_model * patch_num            # 128
    target_window = 64                  # not a lane multiple -> exercises padding

    key = jax.random.PRNGKey(0)
    kx, kw, kb = jax.random.split(key, 3)

    x = jax.random.normal(kx, (B, n_vars, d_model, patch_num), dtype=jnp.float32)

    # PyTorch nn.Linear-style init (uniform bound 1/sqrt(nf)), PyTorch layout.
    bound = 1.0 / (nf ** 0.5)
    weight = jax.random.uniform(kw, (target_window, nf), minval=-bound,
                                maxval=bound, dtype=jnp.float32)
    bias = jax.random.uniform(kb, (target_window,), minval=-bound,
                              maxval=bound, dtype=jnp.float32)

    # One-time parameter prep (transpose + bf16 cast + pad), then jitted forward.
    w_prep, b_prep = prepare_flatten_head_params(weight, bias)
    forward = jax.jit(flatten_head_forward, static_argnums=(3,))

    y = forward(x, w_prep, b_prep, target_window)
    y = jax.block_until_ready(y)
    assert y.shape == (B, n_vars, target_window)

    # Reference matching the kernel's numerics (bf16 operands, f32 accumulate).
    x2d = x.reshape(B * n_vars, nf)
    ref_bf16 = jnp.dot(x2d.astype(jnp.bfloat16), weight.T.astype(jnp.bfloat16),
                       preferred_element_type=jnp.float32) + bias
    ref_bf16 = ref_bf16.reshape(B, n_vars, target_window)
    assert jnp.allclose(y, ref_bf16, atol=1e-3, rtol=1e-3), (
        float(jnp.max(jnp.abs(y - ref_bf16))))

    # Loose sanity check against the full-f32 PyTorch-equivalent reference.
    ref_f32 = (x2d @ weight.T + bias).reshape(B, n_vars, target_window)
    assert jnp.allclose(y, ref_f32, atol=5e-2, rtol=5e-2)

    print("KERNEL_OK")
</pallas_src>

<mosaic_0001>
module attributes {stable_mosaic.version = 11 : i64} {
  func.func @_flatten_head_kernel(%arg0: i32, %arg1: i32, %arg2: i32, %arg3: memref<8x128xbf16, #tpu.memory_space<vmem>>, %arg4: memref<128x128xbf16, #tpu.memory_space<vmem>>, %arg5: memref<1x128xf32, #tpu.memory_space<vmem>>, %arg6: memref<8x128xf32, #tpu.memory_space<vmem>>, %arg7: memref<8x128xf32, #tpu.memory_space<vmem>>) attributes {dimension_semantics = [#tpu.dimension_semantics<parallel>, #tpu.dimension_semantics<parallel>, #tpu.dimension_semantics<arbitrary>], iteration_bounds = array<i64: 1, 1, 1>, scalar_prefetch = 0 : i64, scratch_operands = 1 : i64, tpu.core_type = #tpu.core_type<tc>, window_params = [{transform_indices = @transform_0, window_bounds = array<i64: 8, 128>}, {transform_indices = @transform_1, window_bounds = array<i64: 128, 128>}, {transform_indices = @transform_2, window_bounds = array<i64: 1, 128>}, {transform_indices = @transform_3, window_bounds = array<i64: 8, 128>}]} {
    %c0_i32 = arith.constant 0 : i32
    %0 = arith.cmpi eq, %arg2, %c0_i32 : i32
    %1 = arith.extui %0 : i1 to i32
    %c0_i32_0 = arith.constant 0 : i32
    %2 = arith.cmpi ne, %1, %c0_i32_0 : i32
    scf.if %2 {
      %c0_10 = arith.constant 0 : index
      %c0_11 = arith.constant 0 : index
      %12 = vector.load %arg5[%c0_10, %c0_11] : memref<1x128xf32, #tpu.memory_space<vmem>>, vector<1x128xf32>
      %13 = vector.shape_cast %12 : vector<1x128xf32> to vector<1x128xf32>
      %14 = vector.broadcast %13 : vector<1x128xf32> to vector<8x128xf32>
      %c0_12 = arith.constant 0 : index
      %c0_13 = arith.constant 0 : index
      %15 = vector.load %arg7[%c0_12, %c0_13] : memref<8x128xf32, #tpu.memory_space<vmem>>, vector<8x128xf32>
      tpu.vector_store %arg7[%c0_12, %c0_13], %14 {strides = array<i32>} : memref<8x128xf32, #tpu.memory_space<vmem>>, vector<8x128xf32>,
    } else {
    }
    %c0 = arith.constant 0 : index
    %c0_1 = arith.constant 0 : index
    %3 = vector.load %arg7[%c0, %c0_1] : memref<8x128xf32, #tpu.memory_space<vmem>>, vector<8x128xf32>
    %c0_2 = arith.constant 0 : index
    %c0_3 = arith.constant 0 : index
    %4 = vector.load %arg3[%c0_2, %c0_3] : memref<8x128xbf16, #tpu.memory_space<vmem>>, vector<8x128xbf16>
    %c0_4 = arith.constant 0 : index
    %c0_5 = arith.constant 0 : index
    %5 = vector.load %arg4[%c0_4, %c0_5] : memref<128x128xbf16, #tpu.memory_space<vmem>>, vector<128x128xbf16>
    %cst = arith.constant dense<0.000000e+00> : vector<8x128xf32>
    %6 = tpu.matmul %4, %5, %cst {dimension_numbers = #tpu.dot_dimension_numbers<[1], [0], [0], [1], [0, 0, 1, 1], [], []>} : vector<8x128xbf16>, vector<128x128xbf16>, vector<8x128xf32> -> vector<8x128xf32>
    %7 = arith.addf %3, %6 : vector<8x128xf32>
    %c0_6 = arith.constant 0 : index
    %c0_7 = arith.constant 0 : index
    %8 = vector.load %arg7[%c0_6, %c0_7] : memref<8x128xf32, #tpu.memory_space<vmem>>, vector<8x128xf32>
    tpu.vector_store %arg7[%c0_6, %c0_7], %7 {strides = array<i32>} : memref<8x128xf32, #tpu.memory_space<vmem>>, vector<8x128xf32>,
    %c0_i32_8 = arith.constant 0 : i32
    %9 = arith.cmpi eq, %arg2, %c0_i32_8 : i32
    %10 = arith.extui %9 : i1 to i32
    %c0_i32_9 = arith.constant 0 : i32
    %11 = arith.cmpi ne, %10, %c0_i32_9 : i32
    scf.if %11 {
      %c0_10 = arith.constant 0 : index
      %c0_11 = arith.constant 0 : index
      %12 = vector.load %arg7[%c0_10, %c0_11] : memref<8x128xf32, #tpu.memory_space<vmem>>, vector<8x128xf32>
      %c0_12 = arith.constant 0 : index
      %c0_13 = arith.constant 0 : index
      %13 = vector.load %arg6[%c0_12, %c0_13] : memref<8x128xf32, #tpu.memory_space<vmem>>, vector<8x128xf32>
      tpu.vector_store %arg6[%c0_12, %c0_13], %12 {strides = array<i32>} : memref<8x128xf32, #tpu.memory_space<vmem>>, vector<8x128xf32>,
    } else {
    }
    return
  }
  func.func @transform_0(%arg0: i32, %arg1: i32, %arg2: i32) -> (i32, i32) {
    %c0_i32 = arith.constant 0 : i32
    return %arg0, %arg2 : i32, i32
  }
  func.func @transform_1(%arg0: i32, %arg1: i32, %arg2: i32) -> (i32, i32) {
    %c0_i32 = arith.constant 0 : i32
    return %arg2, %arg1 : i32, i32
  }
  func.func @transform_2(%arg0: i32, %arg1: i32, %arg2: i32) -> (i32, i32) {
    %c0_i32 = arith.constant 0 : i32
    %c0_i32_0 = arith.constant 0 : i32
    return %c0_i32, %arg1 : i32, i32
  }
  func.func @transform_3(%arg0: i32, %arg1: i32, %arg2: i32) -> (i32, i32) {
    %c0_i32 = arith.constant 0 : i32
    return %arg0, %arg1 : i32, i32
  }
}

</mosaic_0001>

<llo_original>
// kernel: flatten_head_forward.1
$region0: #{flatten_head_forward.1}
  #allocation0 [shape = 'u32[]', space=smem, size = 0x4, offset = 0x4, fixed_abs, tag = 'smem constant byte address 0x4 - core index']
  #allocation1 [shape = 'u32[144,128]{1,0:T(1,128)}', space=vmem, size = 0x12000, scoped, tag = 'internal scratch']
  #allocation2 [shape = 'f32[8,128]{1,0:T(8,128)}', space=vmem, size = 0x1000, scoped, tag = 'scratch operand']
  %s0 = inlined_call_operand.vmem [shape: bf16[8,128], index: 0, kind: input, shape index: {}]
  %s1 = inlined_call_operand.vmem [shape: bf16[128,128], index: 1, kind: input, shape index: {}]
  %s2 = inlined_call_operand.vmem [shape: f32[1,128], index: 2, kind: input, shape index: {}]
  %s3 = inlined_call_operand.hbm [shape: f32[8,128], index: 3, kind: output, shape index: {}]
  %s4 = sld [smem:[#allocation0]]
  $region30: #{flatten_head_forward.1} parent=0
    _
  %s6 = ssub.s32 1, %s4
  %s7 = scalar_select 0, %s6, %s4
  $region1: #{flatten_head_forward.1} parent=0
    #allocation3 [shape = 'u8[4096]{0}', space=vmem, size = 0x1000, scoped, tag = 'output window, operand 0, single buffered']
    #allocation4 [shape = 's32[1]{0}', space=sflag, size = 0x4, scoped, tag = 'scoped memory for flatten_head_forward.1']
    %8 = vsyncpa [#allocation4], 0
    // Predicated region
    $region2: #{flatten_head_forward.1} parent=1 // pred_check
      _
    $region3: #{flatten_head_forward.1} parent=1 // pred_check_branch
      %10 = sbr.rel (0) target = $region5
    $region4: #{flatten_head_forward.1} parent=1 // pred_region
      _
    $region5: #{flatten_head_forward.1} parent=1 // pred_fallthru
      _
    // Predicated region
    $region6: #{flatten_head_forward.1} parent=1 // pred_check
      _
    $region7: #{flatten_head_forward.1} parent=1 // pred_check_branch
      %12 = sbr.rel (0) target = $region9
    $region8: #{flatten_head_forward.1} parent=1 // pred_region
      _
    $region9: #{flatten_head_forward.1} parent=1 // pred_fallthru
      _
    // Predicated region
    $region10: #{flatten_head_forward.1} parent=1 // pred_check
      _
    $region11: #{flatten_head_forward.1} parent=1 // pred_check_branch
      %14 = sbr.rel (0) target = $region13
    $region12: #{flatten_head_forward.1} parent=1 // pred_region
      _
    $region13: #{flatten_head_forward.1} parent=1 // pred_fallthru
      _
    %p16 = scmp.eq.s32.totalorder 0, 0
    // Predicated region
    $region14: #{flatten_head_forward.1} parent=1 // pred_check
      %p17 = pneg %p16
    $region15: #{flatten_head_forward.1} parent=1 // pred_check_branch
      %19 = sbr.rel (%p17) target = $region17
    $region16: #{flatten_head_forward.1} parent=1 // pred_region
      %v20 = vld [vmem:[%s2] sm:$0x1]
      %v22 = vlaneseq
      %v23 = vshrl.u32 %v22, 7
      %v24 = vsub.s32 0, %v23
      %v25 = vrot.slane %v20, %v24
      %27 = vst [vmem:[#allocation2] sm:$0xff] %v25
    $region17: #{flatten_head_forward.1} parent=1 // pred_fallthru
      _
    %v28 = vld [vmem:[#allocation2] sm:$0xff]
    %v29 = vld [vmem:[%s0] sm:$0xf]
    %v30 = vld [vmem:[%s1] sm:$0xf]
    %v31 = vld [vmem:[%s1 + $0x4] sm:$0xf]
    %v32 = vld [vmem:[%s1 + $0x8] sm:$0xf]
    %v33 = vld [vmem:[%s1 + $0xc] sm:$0xf]
    %v34 = vld [vmem:[%s1 + $0x10] sm:$0xf]
    %v35 = vld [vmem:[%s1 + $0x14] sm:$0xf]
    %v36 = vld [vmem:[%s1 + $0x18] sm:$0xf]
    %v37 = vld [vmem:[%s1 + $0x1c] sm:$0xf]
    %v38 = vld [vmem:[%s1 + $0x20] sm:$0xf]
    %v39 = vld [vmem:[%s1 + $0x24] sm:$0xf]
    %v40 = vld [vmem:[%s1 + $0x28] sm:$0xf]
    %v41 = vld [vmem:[%s1 + $0x2c] sm:$0xf]
    %v42 = vld [vmem:[%s1 + $0x30] sm:$0xf]
    %v43 = vld [vmem:[%s1 + $0x34] sm:$0xf]
    %v44 = vld [vmem:[%s1 + $0x38] sm:$0xf]
    %v45 = vld [vmem:[%s1 + $0x3c] sm:$0xf]
    %v62 = vunpack.c.l.b16 %v30
    %v63 = vunpack.c.l.b16 %v31
    %v64 = vunpack.c.l.b16 %v32
    %v65 = vunpack.c.l.b16 %v33
    %v66 = vunpack.c.l.b16 %v34
    %v67 = vunpack.c.l.b16 %v35
    %v68 = vunpack.c.l.b16 %v36
    %v69 = vunpack.c.l.b16 %v37
    %v70 = vunpack.c.l.b16 %v38
    %v71 = vunpack.c.l.b16 %v39
    %v72 = vunpack.c.l.b16 %v40
    %v73 = vunpack.c.l.b16 %v41
    %v74 = vunpack.c.l.b16 %v42
    %v75 = vunpack.c.l.b16 %v43
    %v76 = vunpack.c.l.b16 %v44
    %v77 = vunpack.c.l.b16 %v45
    %v78 = vpack.c.b16 %v63, %v62
    %v79 = vpack.c.b16 %v65, %v64
    %v80 = vpack.c.b16 %v67, %v66
    %v81 = vpack.c.b16 %v69, %v68
    %v82 = vpack.c.b16 %v71, %v70
    %v83 = vpack.c.b16 %v73, %v72
    %v84 = vpack.c.b16 %v75, %v74
    %v85 = vpack.c.b16 %v77, %v76
    %94 = vmatprep.subr.bf16.mxu0 0
    %95 = vmatpush1.bf16.msra.mxu0 %v85
    %96 = vmatprep.subr.bf16.mxu0 0
    %97 = vmatpush1.bf16.msra.mxu0 %v84
    %98 = vmatprep.subr.bf16.mxu0 0
    %99 = vmatpush1.bf16.msra.mxu0 %v83
    %100 = vmatprep.subr.bf16.mxu0 0
    %101 = vmatpush1.bf16.msra.mxu0 %v82
    %102 = vmatprep.subr.bf16.mxu0 0
    %103 = vmatpush1.bf16.msra.mxu0 %v81
    %104 = vmatprep.subr.bf16.mxu0 0
    %105 = vmatpush1.bf16.msra.mxu0 %v80
    %106 = vmatprep.subr.bf16.mxu0 0
    %107 = vmatpush1.bf16.msra.mxu0 %v79
    %108 = vmatprep.subr.bf16.mxu0 0
    %109 = vmatpush1.bf16.msra.mxu0 %v78
    %110 = vmatprep.subr.bf16.mxu0 0
    %111 = vmatpush2.bf16.msra.mxu0 0
    %112 = vmatprep.subr.bf16.mxu0 0
    %113 = vmatpush2.bf16.msra.mxu0 0
    %114 = vmatprep.subr.bf16.mxu0 0
    %115 = vmatpush2.bf16.msra.mxu0 0
    %116 = vmatprep.subr.bf16.mxu0 0
    %117 = vmatpush2.bf16.msra.mxu0 0
    %118 = vmatprep.subr.bf16.mxu0 0
    %119 = vmatpush2.bf16.msra.mxu0 0
    %120 = vmatprep.subr.bf16.mxu0 0
    %121 = vmatpush2.bf16.msra.mxu0 0
    %122 = vmatprep.subr.bf16.mxu0 0
    %123 = vmatpush2.bf16.msra.mxu0 0
    %124 = vmatprep.subr.bf16.mxu0 0
    %125 = vmatpush2.bf16.msra.mxu0 0
    %126 = vmatprep.mubr.bf16.mxu0 0
    %127 = vmatmul.mubr.bf16.gmra.mxu0 %v29
    %v128 = vpop.f32.mrf.mxu0
    %v129 = vadd.f32 0.0, %v128
    %v130 = vpop.f32.mrf.mxu0
    %v131 = vpop.f32.mrf.mxu0
    %v132 = vpop.f32.mrf.mxu0
    %133 = vdwg.mxu0
    %v134 = vadd.f32 %v28, %v129
    %135 = vst [vmem:[#allocation2] sm:$0xff] %v134
    // Predicated region
    $region18: #{flatten_head_forward.1} parent=1 // pred_check
      %p136 = pneg %p16
    $region19: #{flatten_head_forward.1} parent=1 // pred_check_branch
      %138 = sbr.rel (%p136) target = $region21
    $region20: #{flatten_head_forward.1} parent=1 // pred_region
      %v139 = vld [vmem:[#allocation2] sm:$0xff]
      %140 = vst [vmem:[#allocation3] sm:$0xff] %v139
    $region21: #{flatten_head_forward.1} parent=1 // pred_fallthru
      _
    // Predicated region
    $region22: #{flatten_head_forward.1} parent=1 // pred_check
      _
    $region23: #{flatten_head_forward.1} parent=1 // pred_check_branch
      %142 = sbr.rel (0) target = $region25
    $region24: #{flatten_head_forward.1} parent=1 // pred_region
      %s144 = ssub.s32 128, 128
      %145 = vsyncadd [#allocation4], %s144
      %s147 = sshll.u32 [#allocation3], 4
      %s148 = int_to_ptr.vmem [resolvable:$true] %s147
      %150 = dma.vmem_to_hbm [thread:$0]  %s148, 128, %s3, [#allocation4]
    $region25: #{flatten_head_forward.1} parent=1 // pred_fallthru
      _
    // Predicated region
    $region26: #{flatten_head_forward.1} parent=1 // pred_check
      _
    $region27: #{flatten_head_forward.1} parent=1 // pred_check_branch
      %152 = sbr.rel (0) target = $region29
    $region28: #{flatten_head_forward.1} parent=1 // pred_region
      %153 = dma.done [#allocation4], 128
    $region29: #{flatten_head_forward.1} parent=1 // pred_fallthru
      _
    %154 = vsyncpa [#allocation4], 1

</llo_original>
